<compile_context>
chip_gen: v7x
topology: tpu7x:2x2x1
jax: 0.10.0
libtpu: 0.0.40
codegen_flags: <defaults>
</compile_context>

<pallas_src>
import functools

import jax
import jax.numpy as jnp
from jax.experimental import pallas as pl
from jax.experimental.pallas import tpu as pltpu


def _int_pow(q, g: int):
    """q**g for a static non-negative integer g via a multiply chain (no EUP pow)."""
    if g == 0:
        return jnp.ones_like(q)
    result = None
    base = q
    while g > 0:
        if g & 1:
            result = base if result is None else result * base
        g >>= 1
        if g:
            base = base * base
    return result


def _rain_focal_loss_kernel(x_ref, t_ref, a_ref, out_ref, *, gamma, n_valid, tile_n):
    # Transposed layout: classes on sublanes, samples on lanes.
    x = x_ref[...].astype(jnp.float32)          # (C, T)  f32 math (v5e has no bf16 VPU/EUP)
    t = t_ref[...]                              # (1, T)  int32
    a = a_ref[...].astype(jnp.float32)          # (C, 1)

    # --- softmax numerator/denominator only (never materialize the full softmax) ---
    m = jnp.max(x, axis=0, keepdims=True)                             # (1, T)
    e = jnp.exp(x - m)                                                # (C, T)
    denom = jnp.sum(e, axis=0, keepdims=True)                         # (1, T)

    # --- one-hot select via iota compare (replaces torch scatter_) ---
    cls = jax.lax.broadcasted_iota(jnp.int32, x.shape, 0)             # (C, T)
    one_hot = cls == t                                                # (C, T) bool
    e_tgt = jnp.sum(jnp.where(one_hot, e, 0.0), axis=0, keepdims=True)    # (1, T)
    alpha_i = jnp.sum(jnp.where(one_hot, a, 0.0), axis=0, keepdims=True)  # (1, T) = alpha[t]

    pt = e_tgt / denom + 1e-10                                        # (1, T)
    logpt = jnp.log(pt)
    q = 1.0 - pt
    if float(gamma) == int(gamma) and int(gamma) >= 0:
        pow_q = _int_pow(q, int(gamma))          # VPU multiply chain: no log/exp, no NaN
    else:
        pow_q = jnp.power(q, float(gamma))
    focal = -pow_q * logpt                                            # (1, T)

    # --- mask samples past the true N (last tile may be padded with garbage) ---
    col = (pl.program_id(0) * tile_n
           + jax.lax.broadcasted_iota(jnp.int32, (1, x.shape[1]), 1))
    valid = col < n_valid                                             # (1, T)
    sum_alpha = jnp.sum(jnp.where(valid, alpha_i, 0.0), keepdims=True)  # (1, 1)
    sum_focal = jnp.sum(jnp.where(valid, focal, 0.0), keepdims=True)    # (1, 1)

    # --- lane-dense (2, 128) partial-sum tile for this grid block ---
    out_ref[0] = jnp.concatenate(
        [jnp.broadcast_to(sum_alpha, (1, 128)),
         jnp.broadcast_to(sum_focal, (1, 128))], axis=0)


def rain_focal_loss(x, target, n_class, alpha=0.75, gamma=2, balance_index=-1,
                    size_average=True, max_tile_n=8192):
    """JAX/Pallas equivalent of rainFocalLoss(nClass, alpha, gamma, ...)(x, target)."""
    # TODO(synk): the reference's input.dim()>2 path (view to (B,C,-1) then softmax over
    # the flattened spatial axis) only type-checks for coincidental shapes in PyTorch;
    # only the standard 2D (N, nClass) path is implemented here.
    assert x.ndim == 2 and x.shape[1] == n_class
    n, c = x.shape

    # alpha construction exactly as the module __init__ does for a float alpha:
    #   alpha_vec = ones(nClass) * (1 - alpha); alpha_vec[balance_index] = alpha
    alpha_vec = jnp.full((n_class,), 1.0 - alpha, dtype=jnp.float32)
    alpha_vec = alpha_vec.at[balance_index].set(alpha)
    a = alpha_vec.reshape(n_class, 1)

    # Layout plumbing: samples on the lane axis.  (No f32 cast here — bf16 DMAs at
    # half the bytes; the kernel casts.)
    xt = x.T                                     # (C, N)
    t = target.reshape(1, -1).astype(jnp.int32)  # (1, N)

    # Tile the sample (lane) axis: multiple of 128, sized so double-buffered inputs
    # plus f32 temporaries fit a conservative 6 MiB budget (v5e default scoped VMEM
    # is 16 MiB).
    itemsize = jnp.dtype(x.dtype).itemsize
    per_col = 2 * (c * itemsize + 4) + (2 * c + 8) * 4   # dbl-buffered inputs + f32 temps
    budget = 6 * 1024 * 1024
    cap = max(128, (int(max_tile_n) // 128) * 128)
    tile_n = min(cap, max(128, (budget // per_col) // 128 * 128))
    if n <= tile_n:
        tile_n = n                                # single full-extent block (always legal)
    num_blocks = pl.cdiv(n, tile_n)

    kernel = functools.partial(
        _rain_focal_loss_kernel, gamma=gamma, n_valid=n, tile_n=tile_n)

    cost = pl.CostEstimate(
        flops=int(n * (6 * c + 12)),
        transcendentals=int(n * (c + 2)),
        bytes_accessed=int(n * c * itemsize + n * 4 + c * 4 + num_blocks * 2 * 128 * 4),
    )

    partials = pl.pallas_call(
        kernel,
        out_shape=jax.ShapeDtypeStruct((num_blocks, 2, 128), jnp.float32),
        grid_spec=pltpu.PrefetchScalarGridSpec(
            num_scalar_prefetch=0,
            grid=(num_blocks,),
            in_specs=[
                pl.BlockSpec((c, tile_n), lambda i: (0, i)),   # logits tile (C, T)
                pl.BlockSpec((1, tile_n), lambda i: (0, i)),   # target tile (1, T)
                pl.BlockSpec((c, 1), lambda i: (0, 0)),        # alpha vector (C, 1)
            ],
            out_specs=pl.BlockSpec((1, 2, 128), lambda i: (i, 0, 0)),
        ),
        compiler_params=pltpu.CompilerParams(
            dimension_semantics=("parallel",),        # lets v7x split blocks across 2 TCs
            vmem_limit_bytes=32 * 1024 * 1024,
        ),
        cost_estimate=cost,
    )(xt, t, a)

    # Tiny final reduce + product in the wrapper (one cheap XLA op).
    sum_alpha = jnp.sum(partials[:, 0, 0])
    sum_focal = jnp.sum(partials[:, 1, 0])
    if size_average:
        nf = jnp.float32(n)
        return (sum_alpha / nf) * (sum_focal / nf)   # mean over N*N broadcast elements
    return sum_alpha * sum_focal                     # sum  over N*N broadcast elements


def _ref_loss(x, target, n_class, alpha=0.75, gamma=2, balance_index=-1,
              size_average=True):
    """Pure-JAX transcription of the PyTorch forward (incl. its broadcasting)."""
    alpha_vec = jnp.full((n_class, 1), 1.0 - alpha, dtype=jnp.float32)
    alpha_vec = alpha_vec.at[balance_index].set(alpha)
    logit = jax.nn.softmax(x.astype(jnp.float32), axis=-1)
    idx = target.reshape(-1, 1)
    one_hot = jax.nn.one_hot(target, n_class, dtype=jnp.float32)
    pt = jnp.sum(one_hot * logit, axis=1) + 1e-10                 # (N,)
    logpt = jnp.log(pt)
    a = alpha_vec[idx]                                            # (N,1,1)
    loss = -1.0 * a * jnp.power(1.0 - pt, gamma) * logpt          # (N,1,N)
    return jnp.mean(loss) if size_average else jnp.sum(loss)


if __name__ == "__main__":
    key = jax.random.PRNGKey(0)

    # Small case (single grid block, size_average=True)
    N, n_class = 16, 8
    kx, kt, kx2, kt2 = jax.random.split(key, 4)
    x = jax.random.normal(kx, (N, n_class), dtype=jnp.float32)
    target = jax.random.randint(kt, (N,), 0, n_class, dtype=jnp.int32)

    out = rain_focal_loss(x, target, n_class, alpha=0.75, gamma=2,
                          balance_index=-1, size_average=True)
    out = jax.block_until_ready(out)
    ref = _ref_loss(x, target, n_class, alpha=0.75, gamma=2,
                    balance_index=-1, size_average=True)
    assert jnp.allclose(out, ref, rtol=1e-5, atol=1e-6), (out, ref)

    # Larger case: multiple grid blocks with a partially-padded last tile,
    # size_average=False branch (max_tile_n shrunk to force 4 blocks).
    N2 = 2000
    x2 = jax.random.normal(kx2, (N2, n_class), dtype=jnp.float32)
    target2 = jax.random.randint(kt2, (N2,), 0, n_class, dtype=jnp.int32)

    out2 = rain_focal_loss(x2, target2, n_class, alpha=0.75, gamma=2,
                           balance_index=-1, size_average=False, max_tile_n=512)
    out2 = jax.block_until_ready(out2)
    ref2 = _ref_loss(x2, target2, n_class, alpha=0.75, gamma=2,
                     balance_index=-1, size_average=False)
    assert jnp.allclose(out2, ref2, rtol=1e-4, atol=1e-5), (out2, ref2)

    print("KERNEL_OK")
</pallas_src>

<mosaic_0001>
module attributes {stable_mosaic.version = 11 : i64} {
  func.func @_rain_focal_loss_kernel(%arg0: i32, %arg1: memref<8x16xf32, #tpu.memory_space<vmem>>, %arg2: memref<1x16xi32, #tpu.memory_space<vmem>>, %arg3: memref<8x1xf32, #tpu.memory_space<vmem>>, %arg4: memref<1x2x128xf32, #tpu.memory_space<vmem>>) attributes {dimension_semantics = [#tpu.dimension_semantics<parallel>], iteration_bounds = array<i64: 1>, scalar_prefetch = 0 : i64, scratch_operands = 0 : i64, tpu.core_type = #tpu.core_type<tc>, window_params = [{transform_indices = @transform_0, window_bounds = array<i64: 8, 16>}, {transform_indices = @transform_1, window_bounds = array<i64: 1, 16>}, {pipeline_mode = #tpu.pipeline_mode<synchronous>, transform_indices = @transform_2, window_bounds = array<i64: 8, 1>}, {transform_indices = @transform_3, window_bounds = array<i64: 1, 2, 128>}]} {
    %c0 = arith.constant 0 : index
    %c0_0 = arith.constant 0 : index
    %0 = vector.load %arg1[%c0, %c0_0] : memref<8x16xf32, #tpu.memory_space<vmem>>, vector<8x16xf32>
    %c0_1 = arith.constant 0 : index
    %c0_2 = arith.constant 0 : index
    %1 = vector.load %arg2[%c0_1, %c0_2] : memref<1x16xi32, #tpu.memory_space<vmem>>, vector<1x16xi32>
    %c0_3 = arith.constant 0 : index
    %c0_4 = arith.constant 0 : index
    %2 = vector.load %arg3[%c0_3, %c0_4] : memref<8x1xf32, #tpu.memory_space<vmem>>, vector<8x1xf32>
    %cst = arith.constant dense<0xFF800000> : vector<16xf32>
    %3 = vector.multi_reduction <maximumf>, %0, %cst [0] : vector<8x16xf32> to vector<16xf32>
    %4 = vector.shape_cast %3 : vector<16xf32> to vector<1x16xf32>
    %5 = vector.broadcast %4 : vector<1x16xf32> to vector<8x16xf32>
    %6 = arith.subf %0, %5 : vector<8x16xf32>
    %7 = math.exp %6 : vector<8x16xf32>
    %cst_5 = arith.constant dense<0.000000e+00> : vector<16xf32>
    %8 = vector.multi_reduction <add>, %7, %cst_5 [0] : vector<8x16xf32> to vector<16xf32>
    %9 = vector.shape_cast %8 : vector<16xf32> to vector<1x16xf32>
    %10 = tpu.iota {dimensions = array<i32: 0>} : vector<8x16xi32>
    %11 = vector.broadcast %1 : vector<1x16xi32> to vector<8x16xi32>
    %12 = arith.cmpi eq, %10, %11 : vector<8x16xi32>
    %cst_6 = arith.constant 0.000000e+00 : f32
    %13 = vector.broadcast %cst_6 : f32 to vector<8x16xf32>
    %14 = arith.select %12, %7, %13 : vector<8x16xi1>, vector<8x16xf32>
    %cst_7 = arith.constant dense<0.000000e+00> : vector<16xf32>
    %15 = vector.multi_reduction <add>, %14, %cst_7 [0] : vector<8x16xf32> to vector<16xf32>
    %16 = vector.shape_cast %15 : vector<16xf32> to vector<1x16xf32>
    %cst_8 = arith.constant 0.000000e+00 : f32
    %17 = vector.shape_cast %2 : vector<8x1xf32> to vector<8x1xf32>
    %18 = vector.broadcast %17 : vector<8x1xf32> to vector<8x16xf32>
    %19 = vector.broadcast %cst_8 : f32 to vector<8x16xf32>
    %20 = arith.select %12, %18, %19 : vector<8x16xi1>, vector<8x16xf32>
    %cst_9 = arith.constant dense<0.000000e+00> : vector<16xf32>
    %21 = vector.multi_reduction <add>, %20, %cst_9 [0] : vector<8x16xf32> to vector<16xf32>
    %22 = vector.shape_cast %21 : vector<16xf32> to vector<1x16xf32>
    %23 = arith.divf %16, %9 : vector<1x16xf32>
    %cst_10 = arith.constant 1.000000e-10 : f32
    %24 = vector.broadcast %cst_10 : f32 to vector<1x16xf32>
    %25 = arith.addf %23, %24 : vector<1x16xf32>
    %26 = math.log %25 : vector<1x16xf32>
    %cst_11 = arith.constant 1.000000e+00 : f32
    %27 = vector.broadcast %cst_11 : f32 to vector<1x16xf32>
    %28 = arith.subf %27, %25 : vector<1x16xf32>
    %29 = arith.mulf %28, %28 : vector<1x16xf32>
    %cst_12 = arith.constant 0.000000e+00 : f32
    %30 = vector.broadcast %cst_12 : f32 to vector<1x16xf32>
    %31 = arith.subf %30, %29 : vector<1x16xf32>
    %32 = arith.mulf %31, %26 : vector<1x16xf32>
    %c16_i32 = arith.constant 16 : i32
    %33 = arith.muli %arg0, %c16_i32 : i32
    %34 = tpu.iota {dimensions = array<i32: 1>} : vector<1x16xi32>
    %35 = vector.broadcast %33 : i32 to vector<1x16xi32>
    %36 = arith.addi %35, %34 : vector<1x16xi32>
    %c16_i32_13 = arith.constant 16 : i32
    %37 = vector.broadcast %c16_i32_13 : i32 to vector<1x16xi32>
    %38 = arith.cmpi slt, %36, %37 : vector<1x16xi32>
    %cst_14 = arith.constant 0.000000e+00 : f32
    %39 = vector.broadcast %cst_14 : f32 to vector<1x16xf32>
    %40 = arith.select %38, %22, %39 : vector<1x16xi1>, vector<1x16xf32>
    %41 = vector.shape_cast %40 : vector<1x16xf32> to vector<1x1x16xf32>
    %cst_15 = arith.constant dense<0.000000e+00> : vector<1xf32>
    %42 = vector.multi_reduction <add>, %41, %cst_15 [1, 2] : vector<1x1x16xf32> to vector<1xf32>
    %43 = vector.shape_cast %42 : vector<1xf32> to vector<1x1x1xf32>
    %44 = vector.extract %43[0, 0, 0] : f32 from vector<1x1x1xf32>
    %45 = vector.broadcast %44 : f32 to vector<1x1xf32>
    %cst_16 = arith.constant 0.000000e+00 : f32
    %46 = vector.broadcast %cst_16 : f32 to vector<1x16xf32>
    %47 = arith.select %38, %32, %46 : vector<1x16xi1>, vector<1x16xf32>
    %48 = vector.shape_cast %47 : vector<1x16xf32> to vector<1x1x16xf32>
    %cst_17 = arith.constant dense<0.000000e+00> : vector<1xf32>
    %49 = vector.multi_reduction <add>, %48, %cst_17 [1, 2] : vector<1x1x16xf32> to vector<1xf32>
    %50 = vector.shape_cast %49 : vector<1xf32> to vector<1x1x1xf32>
    %51 = vector.extract %50[0, 0, 0] : f32 from vector<1x1x1xf32>
    %52 = vector.broadcast %51 : f32 to vector<1x1xf32>
    %53 = vector.shape_cast %45 : vector<1x1xf32> to vector<1x1xf32>
    %54 = vector.broadcast %53 : vector<1x1xf32> to vector<1x128xf32>
    %55 = vector.shape_cast %52 : vector<1x1xf32> to vector<1x1xf32>
    %56 = vector.broadcast %55 : vector<1x1xf32> to vector<1x128xf32>
    %57 = tpu.concatenate %54, %56 in 0 : vector<1x128xf32>, vector<1x128xf32> -> vector<2x128xf32>
    %c0_18 = arith.constant 0 : index
    %c0_19 = arith.constant 0 : index
    %c0_20 = arith.constant 0 : index
    %58 = vector.load %arg4[%c0_18, %c0_19, %c0_20] : memref<1x2x128xf32, #tpu.memory_space<vmem>>, vector<1x2x128xf32>
    %59 = vector.shape_cast %58 : vector<1x2x128xf32> to vector<2x128xf32>
    %60 = vector.shape_cast %57 : vector<2x128xf32> to vector<1x2x128xf32>
    tpu.vector_store %arg4[%c0_18, %c0_19, %c0_20], %60 {strides = array<i32>} : memref<1x2x128xf32, #tpu.memory_space<vmem>>, vector<1x2x128xf32>,
    return
  }
  func.func @transform_0(%arg0: i32) -> (i32, i32) {
    %c0_i32 = arith.constant 0 : i32
    %c0_i32_0 = arith.constant 0 : i32
    return %c0_i32, %arg0 : i32, i32
  }
  func.func @transform_1(%arg0: i32) -> (i32, i32) {
    %c0_i32 = arith.constant 0 : i32
    %c0_i32_0 = arith.constant 0 : i32
    return %c0_i32, %arg0 : i32, i32
  }
  func.func @transform_2(%arg0: i32) -> (i32, i32) {
    %c0_i32 = arith.constant 0 : i32
    %c0_i32_0 = arith.constant 0 : i32
    %c0_i32_1 = arith.constant 0 : i32
    return %c0_i32, %c0_i32_0 : i32, i32
  }
  func.func @transform_3(%arg0: i32) -> (i32, i32, i32) {
    %c0_i32 = arith.constant 0 : i32
    %c0_i32_0 = arith.constant 0 : i32
    %c0_i32_1 = arith.constant 0 : i32
    return %arg0, %c0_i32, %c0_i32_0 : i32, i32, i32
  }
}

</mosaic_0001>

<llo_original>
// kernel: tpu_custom_call.1
$region0: #{tpu_custom_call.1}
  #allocation0 [shape = 'u32[]', space=smem, size = 0x4, offset = 0x4, fixed_abs, tag = 'smem constant byte address 0x4 - core index']
  #allocation1 [shape = 'u32[144,128]{1,0:T(1,128)}', space=vmem, size = 0x12000, scoped, tag = 'internal scratch']
  %s0 = inlined_call_operand.vmem [shape: f32[8,16], index: 0, kind: input, shape index: {}]
  %s1 = inlined_call_operand.vmem [shape: s32[1,16], index: 1, kind: input, shape index: {}]
  %s2 = inlined_call_operand.vmem [shape: f32[8,1], index: 2, kind: input, shape index: {}]
  %s3 = inlined_call_operand.hbm [shape: f32[1,2,128], index: 3, kind: output, shape index: {}]
  %s4 = sld [smem:[#allocation0]]
  $region22: #{tpu_custom_call.1} parent=0
    _
  %s6 = ssub.s32 1, %s4
  %s7 = scalar_select 0, %s6, %s4
  $region1: #{tpu_custom_call.1} parent=0
    #allocation2 [shape = 'u8[1024]{0}', space=vmem, size = 0x400, scoped, tag = 'output window, operand 0, single buffered']
    #allocation3 [shape = 's32[1]{0}', space=sflag, size = 0x4, scoped, tag = 'scoped memory for tpu_custom_call.1']
    %8 = vsyncpa [#allocation3], 0
    // Predicated region
    $region2: #{tpu_custom_call.1} parent=1 // pred_check
      _
    $region3: #{tpu_custom_call.1} parent=1 // pred_check_branch
      %10 = sbr.rel (0) target = $region5
    $region4: #{tpu_custom_call.1} parent=1 // pred_region
      _
    $region5: #{tpu_custom_call.1} parent=1 // pred_fallthru
      _
    // Predicated region
    $region6: #{tpu_custom_call.1} parent=1 // pred_check
      _
    $region7: #{tpu_custom_call.1} parent=1 // pred_check_branch
      %12 = sbr.rel (0) target = $region9
    $region8: #{tpu_custom_call.1} parent=1 // pred_region
      _
    $region9: #{tpu_custom_call.1} parent=1 // pred_fallthru
      _
    // Predicated region
    $region10: #{tpu_custom_call.1} parent=1 // pred_check
      _
    $region11: #{tpu_custom_call.1} parent=1 // pred_check_branch
      %14 = sbr.rel (0) target = $region13
    $region12: #{tpu_custom_call.1} parent=1 // pred_region
      _
    $region13: #{tpu_custom_call.1} parent=1 // pred_fallthru
      _
    %v15 = vld [vmem:[%s0] sm:$0xff]
    %v16 = vld [vmem:[%s1] sm:$0x1]
    %v17 = vld [vmem:[%s2] sm:$0xff]
    %vm18 = vcmask 130048
    %v19 = vsel %vm18, %v15, -inf
    %v20 = vrot.slane %v19, 4
    %v21 = vmax.f32 %v19, %v20
    %v22 = vrot.slane %v21, 2
    %v23 = vmax.f32 %v21, %v22
    %v24 = vrot.slane %v23, 1
    %v25 = vmax.f32 %v23, %v24
    %v26 = vsub.f32 %v15, %v25
    %v27 = vmul.f32 %v26, 1.442695
    %v28 = vpow.pop %v27
    %v29 = vsel %vm18, %v28, 0.0
    %v30 = vrot.slane %v29, 4
    %v31 = vadd.f32 %v29, %v30
    %v32 = vrot.slane %v31, 2
    %v33 = vadd.f32 %v31, %v32
    %v34 = vrot.slane %v33, 1
    %v35 = vadd.f32 %v33, %v34
    %v36 = vlaneseq
    %v37 = vshrl.u32 %v36, 7
    %v38 = vlaneseq
    %v39 = vshrl.u32 %v38, 7
    %v40 = vsub.s32 0, %v39
    %v41 = vrot.slane %v16, %v40
    %vm42 = vcmp.eq.s32.totalorder %v37, %v41
    %v43 = vsel %vm42, %v28, 0.0
    %v44 = vsel %vm18, %v43, 0.0
    %v45 = vrot.slane %v44, 4
    %v46 = vadd.f32 %v44, %v45
    %v47 = vrot.slane %v46, 2
    %v48 = vadd.f32 %v46, %v47
    %v49 = vrot.slane %v48, 1
    %v50 = vadd.f32 %v48, %v49
    %52 = vset.pattern.permute.xlu0 0
    %53 = vperm.xlu0 %52, %v17
    %v54 = vpop.permute.xlu0 %53
    %v56 = vsel %vm42, %v54, 0.0
    %v57 = vsel %vm18, %v56, 0.0
    %v58 = vrot.slane %v57, 4
    %v59 = vadd.f32 %v57, %v58
    %v60 = vrot.slane %v59, 2
    %v61 = vadd.f32 %v59, %v60
    %v62 = vrot.slane %v61, 1
    %v63 = vadd.f32 %v61, %v62
    %v64 = vrcp.pop %v35
    %v65 = vmul.f32 %v50, %v64
    %v66 = vadd.f32 %v65, 1e-10
    %v67 = vlog2.pop %v66
    %v68 = vmul.f32 %v67, 0.6931472
    %v69 = vsub.f32 1.0, %v66
    %v70 = vmul.f32 %v69, %v69
    %v71 = vsub.f32 0.0, %v70
    %v72 = vmul.f32 %v71, %v68
    %s73 = smul.u32 0, 16
    %v74 = vlaneseq
    %v75 = vand.u32 %v74, 127
    %v76 = vstv %s73
    %v77 = vadd.s32 %v76, %v75
    %vm78 = vcmp.lt.s32.totalorder %v77, 16
    %v79 = vsel %vm78, %v63, 0.0
    %vm80 = vcmask 122880
    %v81 = vsel %vm80, %v79, 0.0
    %82 = vadd.xlane.f32.xlu0 %v81
    %v83 = vpop.xlane.xlu0 %82
    %v84 = vrot.slane %v83, 4
    %v85 = vadd.f32 %v83, %v84
    %v86 = vrot.slane %v85, 2
    %v87 = vadd.f32 %v85, %v86
    %v88 = vrot.slane %v87, 1
    %v89 = vadd.f32 %v87, %v88
    %s90 = vtos %v89
    %v91 = vsel %vm78, %v72, 0.0
    %v92 = vsel %vm80, %v91, 0.0
    %93 = vadd.xlane.f32.xlu0 %v92
    %v94 = vpop.xlane.xlu0 %93
    %v95 = vrot.slane %v94, 4
    %v96 = vadd.f32 %v94, %v95
    %v97 = vrot.slane %v96, 2
    %v98 = vadd.f32 %v96, %v97
    %v99 = vrot.slane %v98, 1
    %v100 = vadd.f32 %v98, %v99
    %s101 = vtos %v100
    %v102 = vstv %s90
    %v103 = vstv %s101
    %vm104 = vcmask 1040384
    %v105 = vsel %vm104, %v102, %v103
    %106 = vst [vmem:[#allocation2] sm:$0x3] %v105
    // Predicated region
    $region14: #{tpu_custom_call.1} parent=1 // pred_check
      _
    $region15: #{tpu_custom_call.1} parent=1 // pred_check_branch
      %108 = sbr.rel (0) target = $region17
    $region16: #{tpu_custom_call.1} parent=1 // pred_region
      %s110 = ssub.s32 32, 32
      %111 = vsyncadd [#allocation3], %s110
      %s113 = sshll.u32 [#allocation2], 4
      %s114 = int_to_ptr.vmem [resolvable:$true] %s113
      %116 = dma.vmem_to_hbm [thread:$0]  %s114, 32, %s3, [#allocation3]
    $region17: #{tpu_custom_call.1} parent=1 // pred_fallthru
      _
    // Predicated region
    $region18: #{tpu_custom_call.1} parent=1 // pred_check
      _
    $region19: #{tpu_custom_call.1} parent=1 // pred_check_branch
      %118 = sbr.rel (0) target = $region21
    $region20: #{tpu_custom_call.1} parent=1 // pred_region
      %119 = dma.done [#allocation3], 32
    $region21: #{tpu_custom_call.1} parent=1 // pred_fallthru
      _
    %120 = vsyncpa [#allocation3], 1

</llo_original>
